<compile_context>
chip_gen: v5e
topology: v5e:2x2
jax: 0.10.0
libtpu: 0.0.40
codegen_flags: <defaults>
</compile_context>

<pallas_src>
import jax
import jax.numpy as jnp
import numpy as np
from jax.experimental import pallas as pl
from jax.experimental.pallas import tpu as pltpu

_LANES = 128
_OUT_SUBLANES = 8
_MAX_GROUPS = 128                       # unrolled fold groups per tile (compile bound)
_DEFAULT_TILE_BYTES = 8 * 1024 * 1024   # target bytes per recon/x pipeline buffer
_VMEM_CAP_BYTES = 48 * 1024 * 1024      # safe on v7x (64 MiB physical per TC)


def _round_up(x, m):
    return ((x + m - 1) // m) * m


def _sublane_multiple(dtype):
    # f32 -> 8, bf16/f16 -> 16, int8/fp8 -> 32 (sub-32-bit sublane packing).
    return max(8, 32 // np.dtype(dtype).itemsize)


def _detect_num_tensorcores():
    """Best-effort TensorCore count behind one Pallas device (1 if unknown)."""
    try:
        info = pltpu.get_tpu_info()
        for attr in ("num_cores", "core_count", "num_tensorcores",
                     "tensorcore_count", "num_tensor_cores"):
            v = getattr(info, attr, None)
            if isinstance(v, int) and v >= 1:
                return v
    except Exception:
        pass
    try:
        kind = (jax.devices()[0].device_kind or "").lower()
    except Exception:
        return 1
    # v4 megacore and v7x expose 2 TensorCores behind one Pallas device;
    # v2/v3/v5e/v6e are single-TC per device.
    if "v4" in kind or "v7" in kind or "7x" in kind:
        return 2
    return 1


def _tree_sum(vals):
    vals = list(vals)
    while len(vals) > 1:
        nxt = [vals[i] + vals[i + 1] for i in range(0, len(vals) - 1, 2)]
        if len(vals) & 1:
            nxt.append(vals[-1])
        vals = nxt
    return vals[0]


def _fused_group_sum(a_ref, b_ref, fn, tb, gr, row0, n_valid):
    """sum_g fn(f32(a[g]), f32(b[g])) over gr-row groups of the (tb, W) refs.

    Math is fused into the fold so only a few vregs are live at a time (no
    full-tile temporaries).  If `row0` is not None, rows whose global index is
    >= n_valid contribute zero (ragged last tile / clamped padding tiles).
    """
    n_groups = tb // gr
    fanout = 2 if gr <= 8 else 1        # independent partials break the add chain
    accs = []
    for g in range(n_groups):
        sl = pl.ds(g * gr, gr)          # static, packing-aligned sublane window
        a = a_ref[sl, :].astype(jnp.float32)
        b = b_ref[sl, :].astype(jnp.float32)
        v = fn(a, b)
        if row0 is not None:
            rows = row0 + g * gr + jax.lax.broadcasted_iota(jnp.int32, (gr, 1), 0)
            v = jnp.where(rows < n_valid, v, 0.0)
        if len(accs) < fanout:
            accs.append(v)
        else:
            accs[g % fanout] = accs[g % fanout] + v
    return _tree_sum(accs)


def _make_vae_loss_kernel(B, tb, gr, tiles_per_split, needs_mask, inv_n):
    def mse_term(a, b):
        d = a - b
        return d * d

    def kld_term(m, lv):
        return 1.0 + lv - m * m - jnp.exp(lv)   # exp -> EUP slot (hidden under DMA)

    def kernel(recon_ref, x_ref, mu_ref, logvar_ref, out_ref,
               acc_mse_ref, acc_kld_ref):
        p = pl.program_id(0)            # parallel split
        t = pl.program_id(1)            # reduction step over batch tiles
        lt = p * tiles_per_split + t    # UNCLAMPED logical batch-tile index

        @pl.when(t == 0)
        def _init():
            acc_mse_ref[...] = jnp.zeros_like(acc_mse_ref)
            acc_kld_ref[...] = jnp.zeros_like(acc_kld_ref)

        def accumulate(masked):
            row0 = lt * tb if masked else None
            acc_mse_ref[...] += _fused_group_sum(
                recon_ref, x_ref, mse_term, tb, gr, row0, B)
            acc_kld_ref[...] += _fused_group_sum(
                mu_ref, logvar_ref, kld_term, tb, gr, row0, B)

        if not needs_mask:
            accumulate(False)
        else:
            # Mask only the tiles that straddle the batch boundary (incl. the
            # clamped padding tiles); every other step takes the fast path.
            straddles = (lt + 1) * tb > B

            @pl.when(jnp.logical_not(straddles))
            def _fast():
                accumulate(False)

            @pl.when(straddles)
            def _masked():
                accumulate(True)

        @pl.when(t == tiles_per_split - 1)
        def _finalize():
            mse = jnp.sum(acc_mse_ref[...]) * inv_n
            kld = -0.5 * jnp.sum(acc_kld_ref[...])
            out_ref[...] = jnp.full(out_ref.shape, mse + kld, dtype=jnp.float32)

    return kernel


def vae_loss(recon_x, x, mu, logvar, *,
             target_tile_bytes=_DEFAULT_TILE_BYTES, num_splits=None):
    B, D = recon_x.shape
    Bz, Z = mu.shape
    assert x.shape == (B, D), (x.shape, (B, D))
    assert logvar.shape == (Bz, Z) and Bz == B, (logvar.shape, mu.shape, B)

    # Inputs are consumed in their native dtype (bf16 stays bf16 in HBM); the
    # kernel casts per-group and accumulates in f32.
    gr = max(_sublane_multiple(a.dtype) for a in (recon_x, x, mu, logvar))

    # Batch tile: multiple of the sublane packing, sized for ~target bytes per
    # recon/x buffer, bounded by the unroll cap and floored to the batch so the
    # block never exceeds the array's batch extent (at most one ragged tail).
    big_item = max(np.dtype(recon_x.dtype).itemsize, np.dtype(x.dtype).itemsize)
    tb = (target_tile_bytes // max(1, D * big_item)) // gr * gr
    tb_cap = min(_MAX_GROUPS * gr, max(gr, (B // gr) * gr))
    tb = max(gr, min(tb, tb_cap))

    num_tiles = pl.cdiv(B, tb)
    if num_splits is None:
        num_splits = _detect_num_tensorcores()
    num_splits = max(1, min(int(num_splits), num_tiles))
    tiles_per_split = pl.cdiv(num_tiles, num_splits)
    grid = (num_splits, tiles_per_split)
    # Mask needed iff the last tile is ragged or the grid has padding tiles.
    needs_mask = (num_splits * tiles_per_split * tb) != B
    last_tile = num_tiles - 1

    def batch_tile(p, t):
        # Clamp so padding grid steps re-read a valid tile; the in-kernel row
        # mask (keyed on the UNclamped index) zeroes their contribution.
        return (jnp.minimum(p * tiles_per_split + t, last_tile), 0)

    kernel = _make_vae_loss_kernel(B, tb, gr, tiles_per_split, needs_mask,
                                   1.0 / float(B * D))

    # VMEM budget: double-buffered pipeline buffers + scratch, with margin for
    # live vregs; capped so the same config also fits v7x (64 MiB per TC).
    def _buf_bytes(rows, cols, dtype):
        return rows * _round_up(cols, _LANES) * np.dtype(dtype).itemsize

    pipeline_bytes = 2 * (_buf_bytes(tb, D, recon_x.dtype) +
                          _buf_bytes(tb, D, x.dtype) +
                          _buf_bytes(tb, Z, mu.dtype) +
                          _buf_bytes(tb, Z, logvar.dtype))
    scratch_bytes = (_buf_bytes(gr, D, jnp.float32) +
                     _buf_bytes(gr, Z, jnp.float32))
    vmem_limit = int(min(1.25 * (pipeline_bytes + scratch_bytes) + (4 << 20),
                         _VMEM_CAP_BYTES))

    in_bytes = sum(int(a.size) * np.dtype(a.dtype).itemsize
                   for a in (recon_x, x, mu, logvar))
    out_bytes = num_splits * _OUT_SUBLANES * _LANES * 4
    cost = pl.CostEstimate(flops=int(3 * B * D + 7 * B * Z),
                           transcendentals=int(B * Z),
                           bytes_accessed=int(in_bytes + out_bytes))

    out = pl.pallas_call(
        kernel,
        out_shape=jax.ShapeDtypeStruct((num_splits, _OUT_SUBLANES, _LANES),
                                       jnp.float32),
        grid=grid,
        in_specs=[
            pl.BlockSpec((tb, D), batch_tile),
            pl.BlockSpec((tb, D), batch_tile),
            pl.BlockSpec((tb, Z), batch_tile),
            pl.BlockSpec((tb, Z), batch_tile),
        ],
        out_specs=pl.BlockSpec((1, _OUT_SUBLANES, _LANES), lambda p, t: (p, 0, 0)),
        scratch_shapes=[
            pltpu.VMEM((gr, D), jnp.float32),   # MSE partial sums
            pltpu.VMEM((gr, Z), jnp.float32),   # KLD partial sums
        ],
        compiler_params=pltpu.CompilerParams(
            dimension_semantics=("parallel", "arbitrary"),
            vmem_limit_bytes=vmem_limit,
        ),
        cost_estimate=cost,
    )(recon_x, x, mu, logvar)

    # One partial scalar per parallel split; combine outside the kernel.
    return jnp.sum(out[:, 0, 0])


def vae_loss_ref(recon_x, x, mu, logvar):
    recon_x, x, mu, logvar = (a.astype(jnp.float32)
                              for a in (recon_x, x, mu, logvar))
    mse = jnp.mean((recon_x - x) ** 2)
    kld = -0.5 * jnp.sum(1.0 + logvar - mu ** 2 - jnp.exp(logvar))
    return mse + kld


if __name__ == "__main__":
    key = jax.random.PRNGKey(0)
    k1, k2, k3, k4 = jax.random.split(key, 4)

    # Small VAE-like shapes: flattened 28x28 recon/input, 32-dim latent stats.
    B, D, Z = 40, 784, 32

    recon_x = jax.nn.sigmoid(jax.random.normal(k1, (B, D), dtype=jnp.float32))
    x = jax.random.uniform(k2, (B, D), dtype=jnp.float32)
    mu = 0.5 * jax.random.normal(k3, (B, Z), dtype=jnp.float32)
    logvar = 0.1 * jax.random.normal(k4, (B, Z), dtype=jnp.float32)

    ref = jax.block_until_ready(vae_loss_ref(recon_x, x, mu, logvar))

    # 1) Default config (auto split count / tile size; single tile here).
    loss = jax.block_until_ready(vae_loss(recon_x, x, mu, logvar))
    assert jnp.allclose(loss, ref, rtol=1e-5, atol=1e-4), (loss, ref)

    # 2) Tiny tiles + forced 2-way split: exercises multi-step accumulation,
    #    the clamped padding tile and the boundary row mask (grid = (2, 3)).
    loss_tiled = jax.block_until_ready(
        vae_loss(recon_x, x, mu, logvar,
                 target_tile_bytes=8 * D * 4, num_splits=2))
    assert jnp.allclose(loss_tiled, ref, rtol=1e-5, atol=1e-4), (loss_tiled, ref)

    # 3) bf16 inputs read directly from HBM (no wrapper up-cast); B=40 is not a
    #    multiple of the bf16 sublane packing (16), exercising the ragged tail.
    rb, xb, mb, lb = (a.astype(jnp.bfloat16) for a in (recon_x, x, mu, logvar))
    ref_bf16 = jax.block_until_ready(vae_loss_ref(rb, xb, mb, lb))
    loss_bf16 = jax.block_until_ready(vae_loss(rb, xb, mb, lb))
    assert jnp.allclose(loss_bf16, ref_bf16, rtol=1e-4, atol=1e-2), (
        loss_bf16, ref_bf16)

    print("KERNEL_OK")
</pallas_src>

<mosaic_0001>
module attributes {stable_mosaic.version = 11 : i64} {
  func.func @kernel(%arg0: i32, %arg1: i32, %arg2: memref<40x784xf32, #tpu.memory_space<vmem>>, %arg3: memref<40x784xf32, #tpu.memory_space<vmem>>, %arg4: memref<40x32xf32, #tpu.memory_space<vmem>>, %arg5: memref<40x32xf32, #tpu.memory_space<vmem>>, %arg6: memref<1x8x128xf32, #tpu.memory_space<vmem>>, %arg7: memref<8x784xf32, #tpu.memory_space<vmem>>, %arg8: memref<8x32xf32, #tpu.memory_space<vmem>>) attributes {dimension_semantics = [#tpu.dimension_semantics<parallel>, #tpu.dimension_semantics<arbitrary>], iteration_bounds = array<i64: 1, 1>, scalar_prefetch = 0 : i64, scratch_operands = 2 : i64, tpu.core_type = #tpu.core_type<tc>, window_params = [{transform_indices = @transform_0, window_bounds = array<i64: 40, 784>}, {transform_indices = @transform_1, window_bounds = array<i64: 40, 784>}, {transform_indices = @transform_2, window_bounds = array<i64: 40, 32>}, {transform_indices = @transform_3, window_bounds = array<i64: 40, 32>}, {transform_indices = @transform_4, window_bounds = array<i64: 1, 8, 128>}]} {
    %c0_i32 = arith.constant 0 : i32
    %0 = arith.cmpi eq, %arg1, %c0_i32 : i32
    %1 = arith.extui %0 : i1 to i32
    %c0_i32_0 = arith.constant 0 : i32
    %2 = arith.cmpi ne, %1, %c0_i32_0 : i32
    scf.if %2 {
      %cst_50 = arith.constant 0.000000e+00 : f32
      %80 = vector.broadcast %cst_50 : f32 to vector<8x784xf32>
      %c0_51 = arith.constant 0 : index
      %c0_52 = arith.constant 0 : index
      %81 = vector.load %arg7[%c0_51, %c0_52] : memref<8x784xf32, #tpu.memory_space<vmem>>, vector<8x784xf32>
      tpu.vector_store %arg7[%c0_51, %c0_52], %80 {strides = array<i32>} : memref<8x784xf32, #tpu.memory_space<vmem>>, vector<8x784xf32>,
      %cst_53 = arith.constant 0.000000e+00 : f32
      %82 = vector.broadcast %cst_53 : f32 to vector<8x32xf32>
      %c0_54 = arith.constant 0 : index
      %c0_55 = arith.constant 0 : index
      %83 = vector.load %arg8[%c0_54, %c0_55] : memref<8x32xf32, #tpu.memory_space<vmem>>, vector<8x32xf32>
      tpu.vector_store %arg8[%c0_54, %c0_55], %82 {strides = array<i32>} : memref<8x32xf32, #tpu.memory_space<vmem>>, vector<8x32xf32>,
    } else {
    }
    %c0 = arith.constant 0 : index
    %c0_1 = arith.constant 0 : index
    %3 = vector.load %arg7[%c0, %c0_1] : memref<8x784xf32, #tpu.memory_space<vmem>>, vector<8x784xf32>
    %c0_2 = arith.constant 0 : index
    %c0_3 = arith.constant 0 : index
    %4 = vector.load %arg2[%c0_2, %c0_3] : memref<40x784xf32, #tpu.memory_space<vmem>>, vector<8x784xf32>
    %c0_4 = arith.constant 0 : index
    %c0_5 = arith.constant 0 : index
    %5 = vector.load %arg3[%c0_4, %c0_5] : memref<40x784xf32, #tpu.memory_space<vmem>>, vector<8x784xf32>
    %6 = arith.subf %4, %5 : vector<8x784xf32>
    %7 = arith.mulf %6, %6 : vector<8x784xf32>
    %c8 = arith.constant 8 : index
    %c0_6 = arith.constant 0 : index
    %8 = vector.load %arg2[%c8, %c0_6] : memref<40x784xf32, #tpu.memory_space<vmem>>, vector<8x784xf32>
    %c8_7 = arith.constant 8 : index
    %c0_8 = arith.constant 0 : index
    %9 = vector.load %arg3[%c8_7, %c0_8] : memref<40x784xf32, #tpu.memory_space<vmem>>, vector<8x784xf32>
    %10 = arith.subf %8, %9 : vector<8x784xf32>
    %11 = arith.mulf %10, %10 : vector<8x784xf32>
    %c16 = arith.constant 16 : index
    %c0_9 = arith.constant 0 : index
    %12 = vector.load %arg2[%c16, %c0_9] : memref<40x784xf32, #tpu.memory_space<vmem>>, vector<8x784xf32>
    %c16_10 = arith.constant 16 : index
    %c0_11 = arith.constant 0 : index
    %13 = vector.load %arg3[%c16_10, %c0_11] : memref<40x784xf32, #tpu.memory_space<vmem>>, vector<8x784xf32>
    %14 = arith.subf %12, %13 : vector<8x784xf32>
    %15 = arith.mulf %14, %14 : vector<8x784xf32>
    %16 = arith.addf %7, %15 : vector<8x784xf32>
    %c24 = arith.constant 24 : index
    %c0_12 = arith.constant 0 : index
    %17 = vector.load %arg2[%c24, %c0_12] : memref<40x784xf32, #tpu.memory_space<vmem>>, vector<8x784xf32>
    %c24_13 = arith.constant 24 : index
    %c0_14 = arith.constant 0 : index
    %18 = vector.load %arg3[%c24_13, %c0_14] : memref<40x784xf32, #tpu.memory_space<vmem>>, vector<8x784xf32>
    %19 = arith.subf %17, %18 : vector<8x784xf32>
    %20 = arith.mulf %19, %19 : vector<8x784xf32>
    %21 = arith.addf %11, %20 : vector<8x784xf32>
    %c32 = arith.constant 32 : index
    %c0_15 = arith.constant 0 : index
    %22 = vector.load %arg2[%c32, %c0_15] : memref<40x784xf32, #tpu.memory_space<vmem>>, vector<8x784xf32>
    %c32_16 = arith.constant 32 : index
    %c0_17 = arith.constant 0 : index
    %23 = vector.load %arg3[%c32_16, %c0_17] : memref<40x784xf32, #tpu.memory_space<vmem>>, vector<8x784xf32>
    %24 = arith.subf %22, %23 : vector<8x784xf32>
    %25 = arith.mulf %24, %24 : vector<8x784xf32>
    %26 = arith.addf %16, %25 : vector<8x784xf32>
    %27 = arith.addf %26, %21 : vector<8x784xf32>
    %28 = arith.addf %3, %27 : vector<8x784xf32>
    %c0_18 = arith.constant 0 : index
    %c0_19 = arith.constant 0 : index
    %29 = vector.load %arg7[%c0_18, %c0_19] : memref<8x784xf32, #tpu.memory_space<vmem>>, vector<8x784xf32>
    tpu.vector_store %arg7[%c0_18, %c0_19], %28 {strides = array<i32>} : memref<8x784xf32, #tpu.memory_space<vmem>>, vector<8x784xf32>,
    %c0_20 = arith.constant 0 : index
    %c0_21 = arith.constant 0 : index
    %30 = vector.load %arg8[%c0_20, %c0_21] : memref<8x32xf32, #tpu.memory_space<vmem>>, vector<8x32xf32>
    %c0_22 = arith.constant 0 : index
    %c0_23 = arith.constant 0 : index
    %31 = vector.load %arg4[%c0_22, %c0_23] : memref<40x32xf32, #tpu.memory_space<vmem>>, vector<8x32xf32>
    %c0_24 = arith.constant 0 : index
    %c0_25 = arith.constant 0 : index
    %32 = vector.load %arg5[%c0_24, %c0_25] : memref<40x32xf32, #tpu.memory_space<vmem>>, vector<8x32xf32>
    %cst = arith.constant 1.000000e+00 : f32
    %33 = vector.broadcast %cst : f32 to vector<8x32xf32>
    %34 = arith.addf %33, %32 : vector<8x32xf32>
    %35 = arith.mulf %31, %31 : vector<8x32xf32>
    %36 = arith.subf %34, %35 : vector<8x32xf32>
    %37 = math.exp %32 : vector<8x32xf32>
    %38 = arith.subf %36, %37 : vector<8x32xf32>
    %c8_26 = arith.constant 8 : index
    %c0_27 = arith.constant 0 : index
    %39 = vector.load %arg4[%c8_26, %c0_27] : memref<40x32xf32, #tpu.memory_space<vmem>>, vector<8x32xf32>
    %c8_28 = arith.constant 8 : index
    %c0_29 = arith.constant 0 : index
    %40 = vector.load %arg5[%c8_28, %c0_29] : memref<40x32xf32, #tpu.memory_space<vmem>>, vector<8x32xf32>
    %cst_30 = arith.constant 1.000000e+00 : f32
    %41 = vector.broadcast %cst_30 : f32 to vector<8x32xf32>
    %42 = arith.addf %41, %40 : vector<8x32xf32>
    %43 = arith.mulf %39, %39 : vector<8x32xf32>
    %44 = arith.subf %42, %43 : vector<8x32xf32>
    %45 = math.exp %40 : vector<8x32xf32>
    %46 = arith.subf %44, %45 : vector<8x32xf32>
    %c16_31 = arith.constant 16 : index
    %c0_32 = arith.constant 0 : index
    %47 = vector.load %arg4[%c16_31, %c0_32] : memref<40x32xf32, #tpu.memory_space<vmem>>, vector<8x32xf32>
    %c16_33 = arith.constant 16 : index
    %c0_34 = arith.constant 0 : index
    %48 = vector.load %arg5[%c16_33, %c0_34] : memref<40x32xf32, #tpu.memory_space<vmem>>, vector<8x32xf32>
    %cst_35 = arith.constant 1.000000e+00 : f32
    %49 = vector.broadcast %cst_35 : f32 to vector<8x32xf32>
    %50 = arith.addf %49, %48 : vector<8x32xf32>
    %51 = arith.mulf %47, %47 : vector<8x32xf32>
    %52 = arith.subf %50, %51 : vector<8x32xf32>
    %53 = math.exp %48 : vector<8x32xf32>
    %54 = arith.subf %52, %53 : vector<8x32xf32>
    %55 = arith.addf %38, %54 : vector<8x32xf32>
    %c24_36 = arith.constant 24 : index
    %c0_37 = arith.constant 0 : index
    %56 = vector.load %arg4[%c24_36, %c0_37] : memref<40x32xf32, #tpu.memory_space<vmem>>, vector<8x32xf32>
    %c24_38 = arith.constant 24 : index
    %c0_39 = arith.constant 0 : index
    %57 = vector.load %arg5[%c24_38, %c0_39] : memref<40x32xf32, #tpu.memory_space<vmem>>, vector<8x32xf32>
    %cst_40 = arith.constant 1.000000e+00 : f32
    %58 = vector.broadcast %cst_40 : f32 to vector<8x32xf32>
    %59 = arith.addf %58, %57 : vector<8x32xf32>
    %60 = arith.mulf %56, %56 : vector<8x32xf32>
    %61 = arith.subf %59, %60 : vector<8x32xf32>
    %62 = math.exp %57 : vector<8x32xf32>
    %63 = arith.subf %61, %62 : vector<8x32xf32>
    %64 = arith.addf %46, %63 : vector<8x32xf32>
    %c32_41 = arith.constant 32 : index
    %c0_42 = arith.constant 0 : index
    %65 = vector.load %arg4[%c32_41, %c0_42] : memref<40x32xf32, #tpu.memory_space<vmem>>, vector<8x32xf32>
    %c32_43 = arith.constant 32 : index
    %c0_44 = arith.constant 0 : index
    %66 = vector.load %arg5[%c32_43, %c0_44] : memref<40x32xf32, #tpu.memory_space<vmem>>, vector<8x32xf32>
    %cst_45 = arith.constant 1.000000e+00 : f32
    %67 = vector.broadcast %cst_45 : f32 to vector<8x32xf32>
    %68 = arith.addf %67, %66 : vector<8x32xf32>
    %69 = arith.mulf %65, %65 : vector<8x32xf32>
    %70 = arith.subf %68, %69 : vector<8x32xf32>
    %71 = math.exp %66 : vector<8x32xf32>
    %72 = arith.subf %70, %71 : vector<8x32xf32>
    %73 = arith.addf %55, %72 : vector<8x32xf32>
    %74 = arith.addf %73, %64 : vector<8x32xf32>
    %75 = arith.addf %30, %74 : vector<8x32xf32>
    %c0_46 = arith.constant 0 : index
    %c0_47 = arith.constant 0 : index
    %76 = vector.load %arg8[%c0_46, %c0_47] : memref<8x32xf32, #tpu.memory_space<vmem>>, vector<8x32xf32>
    tpu.vector_store %arg8[%c0_46, %c0_47], %75 {strides = array<i32>} : memref<8x32xf32, #tpu.memory_space<vmem>>, vector<8x32xf32>,
    %c0_i32_48 = arith.constant 0 : i32
    %77 = arith.cmpi eq, %arg1, %c0_i32_48 : i32
    %78 = arith.extui %77 : i1 to i32
    %c0_i32_49 = arith.constant 0 : i32
    %79 = arith.cmpi ne, %78, %c0_i32_49 : i32
    scf.if %79 {
      %c0_50 = arith.constant 0 : index
      %c0_51 = arith.constant 0 : index
      %80 = vector.load %arg7[%c0_50, %c0_51] : memref<8x784xf32, #tpu.memory_space<vmem>>, vector<8x784xf32>
      %81 = vector.shape_cast %80 : vector<8x784xf32> to vector<1x8x784xf32>
      %cst_52 = arith.constant dense<0.000000e+00> : vector<1xf32>
      %82 = vector.multi_reduction <add>, %81, %cst_52 [1, 2] : vector<1x8x784xf32> to vector<1xf32>
      %83 = vector.shape_cast %82 : vector<1xf32> to vector<1x1x1xf32>
      %84 = vector.extract %83[0, 0, 0] : f32 from vector<1x1x1xf32>
      %cst_53 = arith.constant 3.18877537E-5 : f32
      %85 = arith.mulf %84, %cst_53 : f32
      %c0_54 = arith.constant 0 : index
      %c0_55 = arith.constant 0 : index
      %86 = vector.load %arg8[%c0_54, %c0_55] : memref<8x32xf32, #tpu.memory_space<vmem>>, vector<8x32xf32>
      %87 = vector.shape_cast %86 : vector<8x32xf32> to vector<1x8x32xf32>
      %cst_56 = arith.constant dense<0.000000e+00> : vector<1xf32>
      %88 = vector.multi_reduction <add>, %87, %cst_56 [1, 2] : vector<1x8x32xf32> to vector<1xf32>
      %89 = vector.shape_cast %88 : vector<1xf32> to vector<1x1x1xf32>
      %90 = vector.extract %89[0, 0, 0] : f32 from vector<1x1x1xf32>
      %cst_57 = arith.constant -5.000000e-01 : f32
      %91 = arith.mulf %cst_57, %90 : f32
      %92 = arith.addf %85, %91 : f32
      %93 = vector.broadcast %92 : f32 to vector<1x8x128xf32>
      %c0_58 = arith.constant 0 : index
      %c0_59 = arith.constant 0 : index
      %c0_60 = arith.constant 0 : index
      %94 = vector.load %arg6[%c0_58, %c0_59, %c0_60] : memref<1x8x128xf32, #tpu.memory_space<vmem>>, vector<1x8x128xf32>
      tpu.vector_store %arg6[%c0_58, %c0_59, %c0_60], %93 {strides = array<i32>} : memref<1x8x128xf32, #tpu.memory_space<vmem>>, vector<1x8x128xf32>,
    } else {
    }
    return
  }
  func.func @transform_0(%arg0: i32, %arg1: i32) -> (i32, i32) {
    %c1_i32 = arith.constant 1 : i32
    %0 = arith.muli %arg0, %c1_i32 : i32
    %1 = arith.addi %0, %arg1 : i32
    %c0_i32 = arith.constant 0 : i32
    %2 = arith.minsi %1, %c0_i32 : i32
    %c0_i32_0 = arith.constant 0 : i32
    %c0_i32_1 = arith.constant 0 : i32
    return %2, %c0_i32_0 : i32, i32
  }
  func.func @transform_1(%arg0: i32, %arg1: i32) -> (i32, i32) {
    %c1_i32 = arith.constant 1 : i32
    %0 = arith.muli %arg0, %c1_i32 : i32
    %1 = arith.addi %0, %arg1 : i32
    %c0_i32 = arith.constant 0 : i32
    %2 = arith.minsi %1, %c0_i32 : i32
    %c0_i32_0 = arith.constant 0 : i32
    %c0_i32_1 = arith.constant 0 : i32
    return %2, %c0_i32_0 : i32, i32
  }
  func.func @transform_2(%arg0: i32, %arg1: i32) -> (i32, i32) {
    %c1_i32 = arith.constant 1 : i32
    %0 = arith.muli %arg0, %c1_i32 : i32
    %1 = arith.addi %0, %arg1 : i32
    %c0_i32 = arith.constant 0 : i32
    %2 = arith.minsi %1, %c0_i32 : i32
    %c0_i32_0 = arith.constant 0 : i32
    %c0_i32_1 = arith.constant 0 : i32
    return %2, %c0_i32_0 : i32, i32
  }
  func.func @transform_3(%arg0: i32, %arg1: i32) -> (i32, i32) {
    %c1_i32 = arith.constant 1 : i32
    %0 = arith.muli %arg0, %c1_i32 : i32
    %1 = arith.addi %0, %arg1 : i32
    %c0_i32 = arith.constant 0 : i32
    %2 = arith.minsi %1, %c0_i32 : i32
    %c0_i32_0 = arith.constant 0 : i32
    %c0_i32_1 = arith.constant 0 : i32
    return %2, %c0_i32_0 : i32, i32
  }
  func.func @transform_4(%arg0: i32, %arg1: i32) -> (i32, i32, i32) {
    %c0_i32 = arith.constant 0 : i32
    %c0_i32_0 = arith.constant 0 : i32
    %c0_i32_1 = arith.constant 0 : i32
    return %arg0, %c0_i32, %c0_i32_0 : i32, i32, i32
  }
}

</mosaic_0001>

<llo_original>
// kernel: tpu_custom_call.1
$region0: #{tpu_custom_call.1}
  #allocation0 [shape = 'u32[]', space=smem, size = 0x4, offset = 0x4, fixed_abs, tag = 'smem constant byte address 0x4 - core index']
  #allocation1 [shape = 'u32[72,128]{1,0:T(1,128)}', space=vmem, size = 0x9000, scoped, tag = 'internal scratch']
  #allocation2 [shape = 'f32[8,784]{1,0:T(8,128)}', space=vmem, size = 0x7000, scoped, tag = 'scratch operand']
  #allocation3 [shape = 'f32[8,32]{1,0:T(8,128)}', space=vmem, size = 0x1000, scoped, tag = 'scratch operand']
  %s0 = inlined_call_operand.hbm [shape: f32[40,784], index: 0, kind: input, shape index: {}]
  %s1 = inlined_call_operand.hbm [shape: f32[40,784], index: 1, kind: input, shape index: {}]
  %s2 = inlined_call_operand.vmem [shape: f32[40,32], index: 2, kind: input, shape index: {}]
  %s3 = inlined_call_operand.vmem [shape: f32[40,32], index: 3, kind: input, shape index: {}]
  %s4 = inlined_call_operand.hbm [shape: f32[1,8,128], index: 4, kind: output, shape index: {}]
  %s5 = sld [smem:[#allocation0]]
  $region42: #{tpu_custom_call.1} parent=0
    _
  %s7 = ssub.s32 1, %s5
  %s8 = scalar_select 0, %s7, %s5
  $region1: #{tpu_custom_call.1} parent=0
    #allocation4 [shape = 'u8[143360]{0}', space=vmem, size = 0x23000, scoped, tag = 'input window, operand 0, single buffered']
    #allocation5 [shape = 's32[1]{0}', space=sflag, size = 0x4, scoped, tag = 'scoped memory for tpu_custom_call.1']
    #allocation6 [shape = 's32[1]{0}', space=sflag, size = 0x4, scoped, tag = 'scoped memory for tpu_custom_call.1']
    #allocation7 [shape = 'u8[143360]{0}', space=vmem, size = 0x23000, scoped, tag = 'input window, operand 1, single buffered']
    #allocation8 [shape = 's32[1]{0}', space=sflag, size = 0x4, scoped, tag = 'scoped memory for tpu_custom_call.1']
    #allocation9 [shape = 'u8[4096]{0}', space=vmem, size = 0x1000, scoped, tag = 'output window, operand 0, single buffered']
    %9 = vsyncpa [#allocation5], 0
    %10 = vsyncpa [#allocation8], 0
    %11 = vsyncpa [#allocation6], 0
    // Predicated region
    $region2: #{tpu_custom_call.1} parent=1 // pred_check
      _
    $region3: #{tpu_custom_call.1} parent=1 // pred_check_branch
      %13 = sbr.rel (0) target = $region5
    $region4: #{tpu_custom_call.1} parent=1 // pred_region
      %s14 = sadd.s32 0, 0
      %p15 = scmp.lt.s32.totalorder %s14, 0
      %s16 = scalar_select %p15, %s14, 0
      %s17 = smul.u32 5, %s16
      %19 = vsyncadd [#allocation5], 0
      %s20 = smul.addr %s17, 7
      %s21 = smul.addr %s20, 8
      %s22 = scalar_lea.hbm %s0, %s21
      %s23 = sshll.u32 %s22, 4
      %s24 = int_to_ptr.hbm [resolvable:$true] %s23
      %s25 = sshll.u32 [#allocation4], 4
      %s26 = int_to_ptr.vmem [resolvable:$true] %s25
      %31 = dma.hbm_to_vmem [thread:$0]  %s24, 4480, %s26, [#allocation5], 896, 896, 56
    $region5: #{tpu_custom_call.1} parent=1 // pred_fallthru
      _
    // Predicated region
    $region6: #{tpu_custom_call.1} parent=1 // pred_check
      _
    $region7: #{tpu_custom_call.1} parent=1 // pred_check_branch
      %33 = sbr.rel (0) target = $region9
    $region8: #{tpu_custom_call.1} parent=1 // pred_region
      %s34 = sadd.s32 0, 0
      %p35 = scmp.lt.s32.totalorder %s34, 0
      %s36 = scalar_select %p35, %s34, 0
      %s37 = smul.u32 5, %s36
      %39 = vsyncadd [#allocation8], 0
      %s40 = smul.addr %s37, 7
      %s41 = smul.addr %s40, 8
      %s42 = scalar_lea.hbm %s1, %s41
      %s43 = sshll.u32 %s42, 4
      %s44 = int_to_ptr.hbm [resolvable:$true] %s43
      %s45 = sshll.u32 [#allocation7], 4
      %s46 = int_to_ptr.vmem [resolvable:$true] %s45
      %51 = dma.hbm_to_vmem [thread:$0]  %s44, 4480, %s46, [#allocation8], 896, 896, 56
    $region9: #{tpu_custom_call.1} parent=1 // pred_fallthru
      _
    // Predicated region
    $region10: #{tpu_custom_call.1} parent=1 // pred_check
      _
    $region11: #{tpu_custom_call.1} parent=1 // pred_check_branch
      %53 = sbr.rel (0) target = $region13
    $region12: #{tpu_custom_call.1} parent=1 // pred_region
      %s54 = sadd.s32 0, 0
      %p55 = scmp.lt.s32.totalorder %s54, 0
      %s56 = scalar_select %p55, %s54, 0
      %s57 = smul.u32 5, %s56
      %p58 = scmp.lt.s32.totalorder %s57, 4
      %s59 = scalar_select %p58, %s57, 4
      %s60 = smul.addr %s59, 8
      %s61 = scalar_lea.vmem %s2, %s60
      %s62 = sadd.s32 0, 0
      %p63 = scmp.lt.s32.totalorder %s62, 0
      %s64 = scalar_select %p63, %s62, 0
      %s65 = smul.u32 5, %s64
    $region13: #{tpu_custom_call.1} parent=1 // pred_fallthru
      _
    // Predicated region
    $region14: #{tpu_custom_call.1} parent=1 // pred_check
      _
    $region15: #{tpu_custom_call.1} parent=1 // pred_check_branch
      %67 = sbr.rel (0) target = $region17
    $region16: #{tpu_custom_call.1} parent=1 // pred_region
      %s68 = sadd.s32 0, 0
      %p69 = scmp.lt.s32.totalorder %s68, 0
      %s70 = scalar_select %p69, %s68, 0
      %s71 = smul.u32 5, %s70
      %p72 = scmp.lt.s32.totalorder %s71, 4
      %s73 = scalar_select %p72, %s71, 4
      %s74 = smul.addr %s73, 8
      %s75 = scalar_lea.vmem %s3, %s74
      %s76 = sadd.s32 0, 0
      %p77 = scmp.lt.s32.totalorder %s76, 0
      %s78 = scalar_select %p77, %s76, 0
      %s79 = smul.u32 5, %s78
    $region17: #{tpu_custom_call.1} parent=1 // pred_fallthru
      _
    // Predicated region
    $region18: #{tpu_custom_call.1} parent=1 // pred_check
      _
    $region19: #{tpu_custom_call.1} parent=1 // pred_check_branch
      %81 = sbr.rel (0) target = $region21
    $region20: #{tpu_custom_call.1} parent=1 // pred_region
      %83 = dma.done [#allocation5], 4480
    $region21: #{tpu_custom_call.1} parent=1 // pred_fallthru
      _
    // Predicated region
    $region22: #{tpu_custom_call.1} parent=1 // pred_check
      _
    $region23: #{tpu_custom_call.1} parent=1 // pred_check_branch
      %85 = sbr.rel (0) target = $region25
    $region24: #{tpu_custom_call.1} parent=1 // pred_region
      %87 = dma.done [#allocation8], 4480
    $region25: #{tpu_custom_call.1} parent=1 // pred_fallthru
      _
    %s88 = sadd.s32 0, 0
    %p89 = scmp.lt.s32.totalorder %s88, 0
    %s90 = scalar_select %p89, %s88, 0
    %s91 = smul.u32 5, %s90
    %p92 = scmp.lt.s32.totalorder %s91, 4
    %s93 = scalar_select %p92, %s91, 4
    %s94 = smul.addr %s93, 8
    %s95 = scalar_lea.vmem %s2, %s94
    %s96 = sadd.s32 0, 0
    %p97 = scmp.lt.s32.totalorder %s96, 0
    %s98 = scalar_select %p97, %s96, 0
    %s99 = smul.u32 5, %s98
    %p100 = scmp.lt.s32.totalorder %s99, 4
    %s101 = scalar_select %p100, %s99, 4
    %s102 = smul.addr %s101, 8
    %s103 = scalar_lea.vmem %s3, %s102
    %s104 = sadd.s32 0, 0
    %p105 = scmp.lt.s32.totalorder %s104, 0
    %s106 = scalar_select %p105, %s104, 0
    %s107 = smul.u32 5, %s106
    %s108 = sadd.s32 0, 0
    %p109 = scmp.lt.s32.totalorder %s108, 0
    %s110 = scalar_select %p109, %s108, 0
    %s111 = smul.u32 5, %s110
    %s112 = sadd.s32 0, 0
    %p113 = scmp.lt.s32.totalorder %s112, 0
    %s114 = scalar_select %p113, %s112, 0
    %s115 = smul.u32 5, %s114
    %p116 = scmp.lt.s32.totalorder %s115, 4
    %s117 = scalar_select %p116, %s115, 4
    %s118 = smul.addr %s117, 8
    %s119 = scalar_lea.vmem %s2, %s118
    %s120 = sadd.s32 0, 0
    %p121 = scmp.lt.s32.totalorder %s120, 0
    %s122 = scalar_select %p121, %s120, 0
    %s123 = smul.u32 5, %s122
    %s124 = sadd.s32 0, 0
    %p125 = scmp.lt.s32.totalorder %s124, 0
    %s126 = scalar_select %p125, %s124, 0
    %s127 = smul.u32 5, %s126
    %p128 = scmp.lt.s32.totalorder %s127, 4
    %s129 = scalar_select %p128, %s127, 4
    %s130 = smul.addr %s129, 8
    %s131 = scalar_lea.vmem %s3, %s130
    %s132 = sadd.s32 0, 0
    %p133 = scmp.lt.s32.totalorder %s132, 0
    %s134 = scalar_select %p133, %s132, 0
    %s135 = smul.u32 5, %s134
    %p136 = scmp.eq.s32.totalorder 0, 0
    // Predicated region
    $region26: #{tpu_custom_call.1} parent=1 // pred_check
      %p137 = pneg %p136
    $region27: #{tpu_custom_call.1} parent=1 // pred_check_branch
      %139 = sbr.rel (%p137) target = $region29
    $region28: #{tpu_custom_call.1} parent=1 // pred_region
      %140 = vst [vmem:[#allocation2] sm:$0xff] 0.0
      %141 = vst [vmem:[#allocation2 + $0x8] sm:$0xff] 0.0
      %142 = vst [vmem:[#allocation2 + $0x10] sm:$0xff] 0.0
      %143 = vst [vmem:[#allocation2 + $0x18] sm:$0xff] 0.0
      %144 = vst [vmem:[#allocation2 + $0x20] sm:$0xff] 0.0
      %145 = vst [vmem:[#allocation2 + $0x28] sm:$0xff] 0.0
      %vm146 = vcmask 130048
      %147 = vst.msk [vmem:[#allocation2 + $0x30] sm:$0xff] %vm146, 0.0
      %vm148 = vcmask 261120
      %149 = vst.msk [vmem:[#allocation3] sm:$0xff] %vm148, 0.0
    $region29: #{tpu_custom_call.1} parent=1 // pred_fallthru
      _
    %v150 = vld [vmem:[#allocation2] sm:$0xff]
    %v151 = vld [vmem:[#allocation2 + $0x8] sm:$0xff]
    %v152 = vld [vmem:[#allocation2 + $0x10] sm:$0xff]
    %v153 = vld [vmem:[#allocation2 + $0x18] sm:$0xff]
    %v154 = vld [vmem:[#allocation2 + $0x20] sm:$0xff]
    %v155 = vld [vmem:[#allocation2 + $0x28] sm:$0xff]
    %v156 = vld [vmem:[#allocation2 + $0x30] sm:$0xff]
    %v157 = vld [vmem:[#allocation4] sm:$0xff]
    %v158 = vld [vmem:[#allocation4 + $0x8] sm:$0xff]
    %v159 = vld [vmem:[#allocation4 + $0x10] sm:$0xff]
    %v160 = vld [vmem:[#allocation4 + $0x18] sm:$0xff]
    %v161 = vld [vmem:[#allocation4 + $0x20] sm:$0xff]
    %v162 = vld [vmem:[#allocation4 + $0x28] sm:$0xff]
    %v163 = vld [vmem:[#allocation4 + $0x30] sm:$0xff]
    %v164 = vld [vmem:[#allocation7] sm:$0xff]
    %v165 = vld [vmem:[#allocation7 + $0x8] sm:$0xff]
    %v166 = vld [vmem:[#allocation7 + $0x10] sm:$0xff]
    %v167 = vld [vmem:[#allocation7 + $0x18] sm:$0xff]
    %v168 = vld [vmem:[#allocation7 + $0x20] sm:$0xff]
    %v169 = vld [vmem:[#allocation7 + $0x28] sm:$0xff]
    %v170 = vld [vmem:[#allocation7 + $0x30] sm:$0xff]
    %v171 = vsub.f32 %v157, %v164
    %v172 = vsub.f32 %v158, %v165
    %v173 = vsub.f32 %v159, %v166
    %v174 = vsub.f32 %v160, %v167
    %v175 = vsub.f32 %v161, %v168
    %v176 = vsub.f32 %v162, %v169
    %v177 = vsub.f32 %v163, %v170
    %v178 = vmul.f32 %v171, %v171
    %v179 = vmul.f32 %v172, %v172
    %v180 = vmul.f32 %v173, %v173
    %v181 = vmul.f32 %v174, %v174
    %v182 = vmul.f32 %v175, %v175
    %v183 = vmul.f32 %v176, %v176
    %v184 = vmul.f32 %v177, %v177
    %v185 = vld [vmem:[#allocation4 + $0x38] sm:$0xff]
    %v186 = vld [vmem:[#allocation4 + $0x40] sm:$0xff]
    %v187 = vld [vmem:[#allocation4 + $0x48] sm:$0xff]
    %v188 = vld [vmem:[#allocation4 + $0x50] sm:$0xff]
    %v189 = vld [vmem:[#allocation4 + $0x58] sm:$0xff]
    %v190 = vld [vmem:[#allocation4 + $0x60] sm:$0xff]
    %v191 = vld [vmem:[#allocation4 + $0x68] sm:$0xff]
    %v192 = vld [vmem:[#allocation7 + $0x38] sm:$0xff]
    %v193 = vld [vmem:[#allocation7 + $0x40] sm:$0xff]
    %v194 = vld [vmem:[#allocation7 + $0x48] sm:$0xff]
    %v195 = vld [vmem:[#allocation7 + $0x50] sm:$0xff]
    %v196 = vld [vmem:[#allocation7 + $0x58] sm:$0xff]
    %v197 = vld [vmem:[#allocation7 + $0x60] sm:$0xff]
    %v198 = vld [vmem:[#allocation7 + $0x68] sm:$0xff]
    %v199 = vsub.f32 %v185, %v192
    %v200 = vsub.f32 %v186, %v193
    %v201 = vsub.f32 %v187, %v194
    %v202 = vsub.f32 %v188, %v195
    %v203 = vsub.f32 %v189, %v196
    %v204 = vsub.f32 %v190, %v197
    %v205 = vsub.f32 %v191, %v198
    %v206 = vmul.f32 %v199, %v199
    %v207 = vmul.f32 %v200, %v200
    %v208 = vmul.f32 %v201, %v201
    %v209 = vmul.f32 %v202, %v202
    %v210 = vmul.f32 %v203, %v203
    %v211 = vmul.f32 %v204, %v204
    %v212 = vmul.f32 %v205, %v205
    %v213 = vld [vmem:[#allocation4 + $0x70] sm:$0xff]
    %v214 = vld [vmem:[#allocation4 + $0x78] sm:$0xff]
    %v215 = vld [vmem:[#allocation4 + $0x80] sm:$0xff]
    %v216 = vld [vmem:[#allocation4 + $0x88] sm:$0xff]
    %v217 = vld [vmem:[#allocation4 + $0x90] sm:$0xff]
    %v218 = vld [vmem:[#allocation4 + $0x98] sm:$0xff]
    %v219 = vld [vmem:[#allocation4 + $0xa0] sm:$0xff]
    %v220 = vld [vmem:[#allocation7 + $0x70] sm:$0xff]
    %v221 = vld [vmem:[#allocation7 + $0x78] sm:$0xff]
    %v222 = vld [vmem:[#allocation7 + $0x80] sm:$0xff]
    %v223 = vld [vmem:[#allocation7 + $0x88] sm:$0xff]
    %v224 = vld [vmem:[#allocation7 + $0x90] sm:$0xff]
    %v225 = vld [vmem:[#allocation7 + $0x98] sm:$0xff]
    %v226 = vld [vmem:[#allocation7 + $0xa0] sm:$0xff]
    %v227 = vsub.f32 %v213, %v220
    %v228 = vsub.f32 %v214, %v221
    %v229 = vsub.f32 %v215, %v222
    %v230 = vsub.f32 %v216, %v223
    %v231 = vsub.f32 %v217, %v224
    %v232 = vsub.f32 %v218, %v225
    %v233 = vsub.f32 %v219, %v226
    %v234 = vmul.f32 %v227, %v227
    %v235 = vmul.f32 %v228, %v228
    %v236 = vmul.f32 %v229, %v229
    %v237 = vmul.f32 %v230, %v230
    %v238 = vmul.f32 %v231, %v231
    %v239 = vmul.f32 %v232, %v232
    %v240 = vmul.f32 %v233, %v233
    %v241 = vadd.f32 %v178, %v234
    %v242 = vadd.f32 %v179, %v235
    %v243 = vadd.f32 %v180, %v236
    %v244 = vadd.f32 %v181, %v237
    %v245 = vadd.f32 %v182, %v238
    %v246 = vadd.f32 %v183, %v239
    %v247 = vadd.f32 %v184, %v240
    %v248 = vld [vmem:[#allocation4 + $0xa8] sm:$0xff]
    %v249 = vld [vmem:[#allocation4 + $0xb0] sm:$0xff]
    %v250 = vld [vmem:[#allocation4 + $0xb8] sm:$0xff]
    %v251 = vld [vmem:[#allocation4 + $0xc0] sm:$0xff]
    %v252 = vld [vmem:[#allocation4 + $0xc8] sm:$0xff]
    %v253 = vld [vmem:[#allocation4 + $0xd0] sm:$0xff]
    %v254 = vld [vmem:[#allocation4 + $0xd8] sm:$0xff]
    %v255 = vld [vmem:[#allocation7 + $0xa8] sm:$0xff]
    %v256 = vld [vmem:[#allocation7 + $0xb0] sm:$0xff]
    %v257 = vld [vmem:[#allocation7 + $0xb8] sm:$0xff]
    %v258 = vld [vmem:[#allocation7 + $0xc0] sm:$0xff]
    %v259 = vld [vmem:[#allocation7 + $0xc8] sm:$0xff]
    %v260 = vld [vmem:[#allocation7 + $0xd0] sm:$0xff]
    %v261 = vld [vmem:[#allocation7 + $0xd8] sm:$0xff]
    %v262 = vsub.f32 %v248, %v255
    %v263 = vsub.f32 %v249, %v256
    %v264 = vsub.f32 %v250, %v257
    %v265 = vsub.f32 %v251, %v258
    %v266 = vsub.f32 %v252, %v259
    %v267 = vsub.f32 %v253, %v260
    %v268 = vsub.f32 %v254, %v261
    %v269 = vmul.f32 %v262, %v262
    %v270 = vmul.f32 %v263, %v263
    %v271 = vmul.f32 %v264, %v264
    %v272 = vmul.f32 %v265, %v265
    %v273 = vmul.f32 %v266, %v266
    %v274 = vmul.f32 %v267, %v267
    %v275 = vmul.f32 %v268, %v268
    %v276 = vadd.f32 %v206, %v269
    %v277 = vadd.f32 %v207, %v270
    %v278 = vadd.f32 %v208, %v271
    %v279 = vadd.f32 %v209, %v272
    %v280 = vadd.f32 %v210, %v273
    %v281 = vadd.f32 %v211, %v274
    %v282 = vadd.f32 %v212, %v275
    %v283 = vld [vmem:[#allocation4 + $0xe0] sm:$0xff]
    %v284 = vld [vmem:[#allocation4 + $0xe8] sm:$0xff]
    %v285 = vld [vmem:[#allocation4 + $0xf0] sm:$0xff]
    %v286 = vld [vmem:[#allocation4 + $0xf8] sm:$0xff]
    %v287 = vld [vmem:[#allocation4 + $0x100] sm:$0xff]
    %v288 = vld [vmem:[#allocation4 + $0x108] sm:$0xff]
    %v289 = vld [vmem:[#allocation4 + $0x110] sm:$0xff]
    %v290 = vld [vmem:[#allocation7 + $0xe0] sm:$0xff]
    %v291 = vld [vmem:[#allocation7 + $0xe8] sm:$0xff]
    %v292 = vld [vmem:[#allocation7 + $0xf0] sm:$0xff]
    %v293 = vld [vmem:[#allocation7 + $0xf8] sm:$0xff]
    %v294 = vld [vmem:[#allocation7 + $0x100] sm:$0xff]
    %v295 = vld [vmem:[#allocation7 + $0x108] sm:$0xff]
    %v296 = vld [vmem:[#allocation7 + $0x110] sm:$0xff]
    %v297 = vsub.f32 %v283, %v290
    %v298 = vsub.f32 %v284, %v291
    %v299 = vsub.f32 %v285, %v292
    %v300 = vsub.f32 %v286, %v293
    %v301 = vsub.f32 %v287, %v294
    %v302 = vsub.f32 %v288, %v295
    %v303 = vsub.f32 %v289, %v296
    %v304 = vmul.f32 %v297, %v297
    %v305 = vmul.f32 %v298, %v298
    %v306 = vmul.f32 %v299, %v299
    %v307 = vmul.f32 %v300, %v300
    %v308 = vmul.f32 %v301, %v301
    %v309 = vmul.f32 %v302, %v302
    %v310 = vmul.f32 %v303, %v303
    %v311 = vadd.f32 %v241, %v304
    %v312 = vadd.f32 %v242, %v305
    %v313 = vadd.f32 %v243, %v306
    %v314 = vadd.f32 %v244, %v307
    %v315 = vadd.f32 %v245, %v308
    %v316 = vadd.f32 %v246, %v309
    %v317 = vadd.f32 %v247, %v310
    %v318 = vadd.f32 %v311, %v276
    %v319 = vadd.f32 %v312, %v277
    %v320 = vadd.f32 %v313, %v278
    %v321 = vadd.f32 %v314, %v279
    %v322 = vadd.f32 %v315, %v280
    %v323 = vadd.f32 %v316, %v281
    %v324 = vadd.f32 %v317, %v282
    %v325 = vadd.f32 %v150, %v318
    %v326 = vadd.f32 %v151, %v319
    %v327 = vadd.f32 %v152, %v320
    %v328 = vadd.f32 %v153, %v321
    %v329 = vadd.f32 %v154, %v322
    %v330 = vadd.f32 %v155, %v323
    %v331 = vadd.f32 %v156, %v324
    %332 = vst [vmem:[#allocation2] sm:$0xff] %v325
    %333 = vst [vmem:[#allocation2 + $0x8] sm:$0xff] %v326
    %334 = vst [vmem:[#allocation2 + $0x10] sm:$0xff] %v327
    %335 = vst [vmem:[#allocation2 + $0x18] sm:$0xff] %v328
    %336 = vst [vmem:[#allocation2 + $0x20] sm:$0xff] %v329
    %337 = vst [vmem:[#allocation2 + $0x28] sm:$0xff] %v330
    %vm338 = vcmask 130048
    %339 = vst.msk [vmem:[#allocation2 + $0x30] sm:$0xff] %vm338, %v331
    %v340 = vld [vmem:[#allocation3] sm:$0xff]
    %v341 = vld [vmem:[%s119] sm:$0xff]
    %v342 = vld [vmem:[%s131] sm:$0xff]
    %v343 = vadd.f32 %v342, 1.0
    %v344 = vmul.f32 %v341, %v341
    %v345 = vsub.f32 %v343, %v344
    %v346 = vmul.f32 %v342, 1.442695
    %v347 = vpow.pop %v346
    %v348 = vsub.f32 %v345, %v347
    %v349 = vld [vmem:[%s119 + $0x8] sm:$0xff]
    %v350 = vld [vmem:[%s131 + $0x8] sm:$0xff]
    %v351 = vadd.f32 %v350, 1.0
    %v352 = vmul.f32 %v349, %v349
    %v353 = vsub.f32 %v351, %v352
    %v354 = vmul.f32 %v350, 1.442695
    %v355 = vpow.pop %v354
    %v356 = vsub.f32 %v353, %v355
    %v357 = vld [vmem:[%s119 + $0x10] sm:$0xff]
    %v358 = vld [vmem:[%s131 + $0x10] sm:$0xff]
    %v359 = vadd.f32 %v358, 1.0
    %v360 = vmul.f32 %v357, %v357
    %v361 = vsub.f32 %v359, %v360
    %v362 = vmul.f32 %v358, 1.442695
    %v363 = vpow.pop %v362
    %v364 = vsub.f32 %v361, %v363
    %v365 = vadd.f32 %v348, %v364
    %v366 = vld [vmem:[%s119 + $0x18] sm:$0xff]
    %v367 = vld [vmem:[%s131 + $0x18] sm:$0xff]
    %v368 = vadd.f32 %v367, 1.0
    %v369 = vmul.f32 %v366, %v366
    %v370 = vsub.f32 %v368, %v369
    %v371 = vmul.f32 %v367, 1.442695
    %v372 = vpow.pop %v371
    %v373 = vsub.f32 %v370, %v372
    %v374 = vadd.f32 %v356, %v373
    %v375 = vld [vmem:[%s119 + $0x20] sm:$0xff]
    %v376 = vld [vmem:[%s131 + $0x20] sm:$0xff]
    %v377 = vadd.f32 %v376, 1.0
    %v378 = vmul.f32 %v375, %v375
    %v379 = vsub.f32 %v377, %v378
    %v380 = vmul.f32 %v376, 1.442695
    %v381 = vpow.pop %v380
    %v382 = vsub.f32 %v379, %v381
    %v383 = vadd.f32 %v365, %v382
    %v384 = vadd.f32 %v383, %v374
    %v385 = vadd.f32 %v340, %v384
    %vm386 = vcmask 261120
    %387 = vst.msk [vmem:[#allocation3] sm:$0xff] %vm386, %v385
    // Predicated region
    $region30: #{tpu_custom_call.1} parent=1 // pred_check
      %p388 = pneg %p136
    $region31: #{tpu_custom_call.1} parent=1 // pred_check_branch
      %390 = sbr.rel (%p388) target = $region33
    $region32: #{tpu_custom_call.1} parent=1 // pred_region
      %v391 = vld [vmem:[#allocation2] sm:$0xff]
      %v392 = vld [vmem:[#allocation2 + $0x8] sm:$0xff]
      %v393 = vld [vmem:[#allocation2 + $0x10] sm:$0xff]
      %v394 = vld [vmem:[#allocation2 + $0x18] sm:$0xff]
      %v395 = vld [vmem:[#allocation2 + $0x20] sm:$0xff]
      %v396 = vld [vmem:[#allocation2 + $0x28] sm:$0xff]
      %v397 = vld [vmem:[#allocation2 + $0x30] sm:$0xff]
      %v398 = vadd.f32 %v391, %v392
      %v399 = vadd.f32 %v398, %v393
      %v400 = vadd.f32 %v399, %v394
      %v401 = vadd.f32 %v400, %v395
      %v402 = vadd.f32 %v401, %v396
      %v403 = vsel %vm338, %v397, 0.0
      %v404 = vadd.f32 %v402, %v403
      %405 = vadd.xlane.f32.xlu0 %v404
      %v406 = vpop.xlane.xlu0 %405
      %v407 = vrot.slane %v406, 4
      %v408 = vadd.f32 %v406, %v407
      %v409 = vrot.slane %v408, 2
      %v410 = vadd.f32 %v408, %v409
      %v411 = vrot.slane %v410, 1
      %v412 = vadd.f32 %v410, %v411
      %s413 = vtos %v412
      %s414 = smul.f32 %s413, 3.1887754e-05
      %v415 = vld [vmem:[#allocation3] sm:$0xff]
      %v416 = vsel %vm386, %v415, 0.0
      %417 = vadd.xlane.f32.xlu0 %v416
      %v418 = vpop.xlane.xlu0 %417
      %v419 = vrot.slane %v418, 4
      %v420 = vadd.f32 %v418, %v419
      %v421 = vrot.slane %v420, 2
      %v422 = vadd.f32 %v420, %v421
      %v423 = vrot.slane %v422, 1
      %v424 = vadd.f32 %v422, %v423
      %s425 = vtos %v424
      %s426 = smul.f32 %s425, -0.5
      %s427 = sadd.f32 %s414, %s426
      %v428 = vstv %s427
      %429 = vst [vmem:[#allocation9] sm:$0xff] %v428
    $region33: #{tpu_custom_call.1} parent=1 // pred_fallthru
      _
    // Predicated region
    $region34: #{tpu_custom_call.1} parent=1 // pred_check
      _
    $region35: #{tpu_custom_call.1} parent=1 // pred_check_branch
      %431 = sbr.rel (0) target = $region37
    $region36: #{tpu_custom_call.1} parent=1 // pred_region
      %433 = vsyncadd [#allocation6], 0
      %s435 = sshll.u32 [#allocation9], 4
      %s436 = int_to_ptr.vmem [resolvable:$true] %s435
      %s437 = sshll.u32 %s4, 4
      %s438 = int_to_ptr.hbm [resolvable:$true] %s437
      %440 = dma.vmem_to_hbm [thread:$0]  %s436, 128, %s438, [#allocation6]
    $region37: #{tpu_custom_call.1} parent=1 // pred_fallthru
      _
    // Predicated region
    $region38: #{tpu_custom_call.1} parent=1 // pred_check
      _
    $region39: #{tpu_custom_call.1} parent=1 // pred_check_branch
      %442 = sbr.rel (0) target = $region41
    $region40: #{tpu_custom_call.1} parent=1 // pred_region
      %444 = dma.done [#allocation6], 128
    $region41: #{tpu_custom_call.1} parent=1 // pred_fallthru
      _
    %445 = vsyncpa [#allocation5], 1
    %446 = vsyncpa [#allocation8], 1
    %447 = vsyncpa [#allocation6], 1

</llo_original>
